<compile_context>
chip_gen: v5e
topology: v5e:2x2
jax: 0.10.0
libtpu: 0.0.40
codegen_flags: <defaults>
</compile_context>

<pallas_src>
import functools

import jax
import jax.numpy as jnp
from jax import lax
from jax.experimental import pallas as pl
from jax.experimental.pallas import tpu as pltpu

LANE = 128     # lane width of the flattened layout
SUBLANE = 8    # f32 sublane count


def _accumulate_rows(pred_ref, actual_ref, out_ref, n_rows, chunk_rows):
    """Add sum((log(relu(p)+1)-log(a+1))^2) over the first n_rows (static)
    rows of the current tile into the resident (1, 8, 128) output block."""

    def chunk_sum(row0, rows):
        p = pred_ref[pl.ds(row0, rows), :].astype(jnp.float32)
        a = actual_ref[pl.ds(row0, rows), :].astype(jnp.float32)
        p = jnp.maximum(p, jnp.float32(0.0))          # torch.where(p<0, 0, p)
        diff = jnp.log(p + 1.0) - jnp.log(a + 1.0)
        d2 = diff * diff
        # (rows,128) -> (rows//8, 8, 128) -> (8, 128): pure VPU adds.
        return jnp.sum(d2.reshape(rows // SUBLANE, SUBLANE, LANE), axis=0)

    n_full = n_rows // chunk_rows
    rem_rows = n_rows % chunk_rows                     # static, multiple of 8

    acc = jnp.zeros((SUBLANE, LANE), jnp.float32)
    if n_full > 0:
        def body(k, a_carry):
            row0 = pl.multiple_of(k * chunk_rows, chunk_rows)
            return a_carry + chunk_sum(row0, chunk_rows)
        acc = lax.fori_loop(0, n_full, body, acc)
    if rem_rows > 0:
        acc = acc + chunk_sum(n_full * chunk_rows, rem_rows)

    out_ref[0] = out_ref[0] + acc


def _rmsle_kernel(pred_ref, actual_ref, out_ref, *, tiles_per_slice, num_tiles,
                  grid_tiles, tm, rows_last, chunk_rows):
    c = pl.program_id(0)                               # parallel slice
    i = pl.program_id(1)                               # reduction step

    @pl.when(i == 0)
    def _():
        out_ref[...] = jnp.zeros_like(out_ref)

    t = c * tiles_per_slice + i                        # unclamped logical tile

    ragged = rows_last != tm                           # static
    surplus = grid_tiles != num_tiles                  # static

    if not ragged and not surplus:
        # Every grid step is a full, valid tile: no masking, no branching.
        _accumulate_rows(pred_ref, actual_ref, out_ref, tm, chunk_rows)
    elif not ragged:
        # Only a clamped surplus tile exists; skip it entirely.
        @pl.when(t < num_tiles)
        def _():
            _accumulate_rows(pred_ref, actual_ref, out_ref, tm, chunk_rows)
    else:
        # Interior tiles: unmasked full accumulate.
        @pl.when(t < num_tiles - 1)
        def _():
            _accumulate_rows(pred_ref, actual_ref, out_ref, tm, chunk_rows)

        # Last (short) tile: statically process only its valid rows, so no
        # garbage past the slab ever enters the compute.
        @pl.when(t == num_tiles - 1)
        def _():
            _accumulate_rows(pred_ref, actual_ref, out_ref, rows_last, chunk_rows)


def rmsle_loss(pred, actual, *, tile_rows=4096, chunk_rows=512):
    """RMSLE(pred, actual) -> scalar float32, computed with a Pallas kernel."""
    assert pred.shape == actual.shape, "pred/actual must have the same shape"
    assert tile_rows % SUBLANE == 0 and chunk_rows % SUBLANE == 0
    n = pred.size
    assert n > 0

    flat_p = pred.reshape(-1)
    flat_a = actual.reshape(-1)

    block_elems = SUBLANE * LANE                       # 1024
    n_main = (n // block_elems) * block_elems          # kernel-covered prefix
    rem = n - n_main                                   # <=1023 tail elements

    total = jnp.float32(0.0)

    if n_main > 0:
        m = n_main // LANE                             # rows, multiple of 8
        p2d = flat_p[:n_main].reshape(m, LANE)
        a2d = flat_a[:n_main].reshape(m, LANE)

        tm = min(tile_rows, m)                         # multiple of 8
        num_tiles = -(-m // tm)
        num_slices = 2 if num_tiles >= 2 else 1
        tiles_per_slice = -(-num_tiles // num_slices)
        grid_tiles = num_slices * tiles_per_slice
        rows_last = m - (num_tiles - 1) * tm           # in (0, tm], mult of 8

        def in_map(c, i):
            # Clamp so the surplus tile's DMA never starts fully out of
            # bounds; its compute is skipped inside the kernel.
            return (jnp.minimum(c * tiles_per_slice + i, num_tiles - 1), 0)

        kernel = functools.partial(
            _rmsle_kernel,
            tiles_per_slice=tiles_per_slice,
            num_tiles=num_tiles,
            grid_tiles=grid_tiles,
            tm=tm,
            rows_last=rows_last,
            chunk_rows=chunk_rows,
        )

        itemsize = jnp.dtype(pred.dtype).itemsize
        cost = pl.CostEstimate(
            flops=6 * n_main,
            transcendentals=2 * n_main,
            bytes_accessed=2 * n_main * itemsize + num_slices * SUBLANE * LANE * 4,
        )

        partials = pl.pallas_call(
            kernel,
            out_shape=jax.ShapeDtypeStruct((num_slices, SUBLANE, LANE),
                                           jnp.float32),
            grid_spec=pltpu.PrefetchScalarGridSpec(
                num_scalar_prefetch=0,
                grid=(num_slices, tiles_per_slice),
                in_specs=[
                    pl.BlockSpec((tm, LANE), in_map),
                    pl.BlockSpec((tm, LANE), in_map),
                ],
                out_specs=pl.BlockSpec((1, SUBLANE, LANE),
                                       lambda c, i: (c, 0, 0)),
            ),
            compiler_params=pltpu.CompilerParams(
                dimension_semantics=("parallel", "arbitrary"),
            ),
            cost_estimate=cost,
        )(p2d, a2d)
        total = total + jnp.sum(partials)

    if rem > 0:
        # Tiny ragged tail (<1024 elements) in plain JAX — avoids padding
        # copies of the full inputs.
        pr = flat_p[n_main:].astype(jnp.float32)
        ar = flat_a[n_main:].astype(jnp.float32)
        pr = jnp.maximum(pr, jnp.float32(0.0))
        d = jnp.log(pr + 1.0) - jnp.log(ar + 1.0)
        total = total + jnp.sum(d * d)

    return jnp.sqrt(total / jnp.float32(n))


def rmsle_ref(pred, actual):
    """Pure-JAX reference matching the PyTorch module."""
    p = pred.astype(jnp.float32)
    a = actual.astype(jnp.float32)
    p = jnp.where(p < 0.0, 0.0, p)
    return jnp.sqrt(jnp.mean((jnp.log(p + 1.0) - jnp.log(a + 1.0)) ** 2))


if __name__ == "__main__":
    key = jax.random.PRNGKey(0)
    k_pred, k_actual = jax.random.split(key)

    # Small shapes consistent with a regression head: (batch, channels, H, W).
    shape = (2, 4, 16, 16)
    # pred can be negative (the module clamps it); actual is non-negative.
    pred = jax.random.normal(k_pred, shape, dtype=jnp.float32) * 2.0
    actual = jax.random.uniform(k_actual, shape, dtype=jnp.float32) * 5.0

    loss = rmsle_loss(pred, actual)
    loss = jax.block_until_ready(loss)

    ref = rmsle_ref(pred, actual)
    assert jnp.allclose(loss, ref, rtol=1e-5, atol=1e-6), (loss, ref)

    print("KERNEL_OK")
</pallas_src>

<mosaic_0001>
module attributes {stable_mosaic.version = 11 : i64} {
  func.func @_rmsle_kernel(%arg0: i32, %arg1: i32, %arg2: memref<16x128xf32, #tpu.memory_space<vmem>>, %arg3: memref<16x128xf32, #tpu.memory_space<vmem>>, %arg4: memref<1x8x128xf32, #tpu.memory_space<vmem>>) attributes {dimension_semantics = [#tpu.dimension_semantics<parallel>, #tpu.dimension_semantics<arbitrary>], iteration_bounds = array<i64: 1, 1>, scalar_prefetch = 0 : i64, scratch_operands = 0 : i64, tpu.core_type = #tpu.core_type<tc>, window_params = [{transform_indices = @transform_0, window_bounds = array<i64: 16, 128>}, {transform_indices = @transform_1, window_bounds = array<i64: 16, 128>}, {transform_indices = @transform_2, window_bounds = array<i64: 1, 8, 128>}]} {
    %c0_i32 = arith.constant 0 : i32
    %0 = arith.cmpi eq, %arg1, %c0_i32 : i32
    %1 = arith.extui %0 : i1 to i32
    %c0_i32_0 = arith.constant 0 : i32
    %2 = arith.cmpi ne, %1, %c0_i32_0 : i32
    scf.if %2 {
      %cst_14 = arith.constant 0.000000e+00 : f32
      %25 = vector.broadcast %cst_14 : f32 to vector<1x8x128xf32>
      %c0_15 = arith.constant 0 : index
      %c0_16 = arith.constant 0 : index
      %c0_17 = arith.constant 0 : index
      %26 = vector.load %arg4[%c0_15, %c0_16, %c0_17] : memref<1x8x128xf32, #tpu.memory_space<vmem>>, vector<1x8x128xf32>
      tpu.vector_store %arg4[%c0_15, %c0_16, %c0_17], %25 {strides = array<i32>} : memref<1x8x128xf32, #tpu.memory_space<vmem>>, vector<1x8x128xf32>,
    } else {
    }
    %cst = arith.constant 0.000000e+00 : f32
    %3 = vector.broadcast %cst : f32 to vector<8x128xf32>
    %c0 = arith.constant 0 : index
    %c0_1 = arith.constant 0 : index
    %4 = vector.load %arg2[%c0, %c0_1] : memref<16x128xf32, #tpu.memory_space<vmem>>, vector<16x128xf32>
    %c0_2 = arith.constant 0 : index
    %c0_3 = arith.constant 0 : index
    %5 = vector.load %arg3[%c0_2, %c0_3] : memref<16x128xf32, #tpu.memory_space<vmem>>, vector<16x128xf32>
    %cst_4 = arith.constant 0.000000e+00 : f32
    %6 = vector.broadcast %cst_4 : f32 to vector<16x128xf32>
    %7 = arith.maximumf %4, %6 : vector<16x128xf32>
    %cst_5 = arith.constant 1.000000e+00 : f32
    %8 = vector.broadcast %cst_5 : f32 to vector<16x128xf32>
    %9 = arith.addf %7, %8 : vector<16x128xf32>
    %10 = math.log %9 : vector<16x128xf32>
    %cst_6 = arith.constant 1.000000e+00 : f32
    %11 = vector.broadcast %cst_6 : f32 to vector<16x128xf32>
    %12 = arith.addf %5, %11 : vector<16x128xf32>
    %13 = math.log %12 : vector<16x128xf32>
    %14 = arith.subf %10, %13 : vector<16x128xf32>
    %15 = arith.mulf %14, %14 : vector<16x128xf32>
    %16 = vector.shape_cast %15 : vector<16x128xf32> to vector<2x8x128xf32>
    %cst_7 = arith.constant dense<0.000000e+00> : vector<8x128xf32>
    %17 = vector.multi_reduction <add>, %16, %cst_7 [0] : vector<2x8x128xf32> to vector<8x128xf32>
    %18 = arith.addf %3, %17 : vector<8x128xf32>
    %c0_8 = arith.constant 0 : index
    %c0_9 = arith.constant 0 : index
    %c0_10 = arith.constant 0 : index
    %19 = vector.load %arg4[%c0_8, %c0_9, %c0_10] : memref<1x8x128xf32, #tpu.memory_space<vmem>>, vector<1x8x128xf32>
    %20 = vector.shape_cast %19 : vector<1x8x128xf32> to vector<8x128xf32>
    %21 = arith.addf %20, %18 : vector<8x128xf32>
    %c0_11 = arith.constant 0 : index
    %c0_12 = arith.constant 0 : index
    %c0_13 = arith.constant 0 : index
    %22 = vector.load %arg4[%c0_11, %c0_12, %c0_13] : memref<1x8x128xf32, #tpu.memory_space<vmem>>, vector<1x8x128xf32>
    %23 = vector.shape_cast %22 : vector<1x8x128xf32> to vector<8x128xf32>
    %24 = vector.shape_cast %21 : vector<8x128xf32> to vector<1x8x128xf32>
    tpu.vector_store %arg4[%c0_11, %c0_12, %c0_13], %24 {strides = array<i32>} : memref<1x8x128xf32, #tpu.memory_space<vmem>>, vector<1x8x128xf32>,
    return
  }
  func.func @transform_0(%arg0: i32, %arg1: i32) -> (i32, i32) {
    %c1_i32 = arith.constant 1 : i32
    %0 = arith.muli %arg0, %c1_i32 : i32
    %1 = arith.addi %0, %arg1 : i32
    %c0_i32 = arith.constant 0 : i32
    %2 = arith.minsi %1, %c0_i32 : i32
    %c0_i32_0 = arith.constant 0 : i32
    %c0_i32_1 = arith.constant 0 : i32
    return %2, %c0_i32_0 : i32, i32
  }
  func.func @transform_1(%arg0: i32, %arg1: i32) -> (i32, i32) {
    %c1_i32 = arith.constant 1 : i32
    %0 = arith.muli %arg0, %c1_i32 : i32
    %1 = arith.addi %0, %arg1 : i32
    %c0_i32 = arith.constant 0 : i32
    %2 = arith.minsi %1, %c0_i32 : i32
    %c0_i32_0 = arith.constant 0 : i32
    %c0_i32_1 = arith.constant 0 : i32
    return %2, %c0_i32_0 : i32, i32
  }
  func.func @transform_2(%arg0: i32, %arg1: i32) -> (i32, i32, i32) {
    %c0_i32 = arith.constant 0 : i32
    %c0_i32_0 = arith.constant 0 : i32
    %c0_i32_1 = arith.constant 0 : i32
    return %arg0, %c0_i32, %c0_i32_0 : i32, i32, i32
  }
}

</mosaic_0001>

<llo_original>
// kernel: tpu_custom_call.1
$region0: #{tpu_custom_call.1}
  #allocation0 [shape = 'u32[]', space=smem, size = 0x4, offset = 0x4, fixed_abs, tag = 'smem constant byte address 0x4 - core index']
  #allocation1 [shape = 'u32[72,128]{1,0:T(1,128)}', space=vmem, size = 0x9000, scoped, tag = 'internal scratch']
  %s0 = inlined_call_operand.hbm [shape: f32[16,128], index: 0, kind: input, shape index: {}]
  %s1 = inlined_call_operand.hbm [shape: f32[16,128], index: 1, kind: input, shape index: {}]
  %s2 = inlined_call_operand.hbm [shape: f32[1,8,128], index: 2, kind: output, shape index: {}]
  %s3 = sld [smem:[#allocation0]]
  $region30: #{tpu_custom_call.1} parent=0
    _
  %s5 = ssub.s32 1, %s3
  %s6 = scalar_select 0, %s5, %s3
  $region1: #{tpu_custom_call.1} parent=0
    #allocation2 [shape = 'u8[8192]{0}', space=vmem, size = 0x2000, scoped, tag = 'input window, operand 0, single buffered']
    #allocation3 [shape = 's32[1]{0}', space=sflag, size = 0x4, scoped, tag = 'scoped memory for tpu_custom_call.1']
    #allocation4 [shape = 's32[1]{0}', space=sflag, size = 0x4, scoped, tag = 'scoped memory for tpu_custom_call.1']
    #allocation5 [shape = 'u8[8192]{0}', space=vmem, size = 0x2000, scoped, tag = 'input window, operand 1, single buffered']
    #allocation6 [shape = 's32[1]{0}', space=sflag, size = 0x4, scoped, tag = 'scoped memory for tpu_custom_call.1']
    #allocation7 [shape = 'u8[4096]{0}', space=vmem, size = 0x1000, scoped, tag = 'output window, operand 0, single buffered']
    %7 = vsyncpa [#allocation3], 0
    %8 = vsyncpa [#allocation6], 0
    %9 = vsyncpa [#allocation4], 0
    // Predicated region
    $region2: #{tpu_custom_call.1} parent=1 // pred_check
      _
    $region3: #{tpu_custom_call.1} parent=1 // pred_check_branch
      %11 = sbr.rel (0) target = $region5
    $region4: #{tpu_custom_call.1} parent=1 // pred_region
      %s12 = sadd.s32 0, 0
      %p13 = scmp.lt.s32.totalorder %s12, 0
      %s14 = scalar_select %p13, %s12, 0
      %s15 = smul.u32 2, %s14
      %17 = vsyncadd [#allocation3], 0
      %s18 = smul.addr %s15, 8
      %s19 = scalar_lea.hbm %s0, %s18
      %s20 = sshll.u32 %s19, 4
      %s21 = int_to_ptr.hbm [resolvable:$true] %s20
      %s22 = sshll.u32 [#allocation2], 4
      %s23 = int_to_ptr.vmem [resolvable:$true] %s22
      %28 = dma.hbm_to_vmem [thread:$0]  %s21, 256, %s23, [#allocation3], 128, 128, 8
    $region5: #{tpu_custom_call.1} parent=1 // pred_fallthru
      _
    // Predicated region
    $region6: #{tpu_custom_call.1} parent=1 // pred_check
      _
    $region7: #{tpu_custom_call.1} parent=1 // pred_check_branch
      %30 = sbr.rel (0) target = $region9
    $region8: #{tpu_custom_call.1} parent=1 // pred_region
      %s31 = sadd.s32 0, 0
      %p32 = scmp.lt.s32.totalorder %s31, 0
      %s33 = scalar_select %p32, %s31, 0
      %s34 = smul.u32 2, %s33
      %36 = vsyncadd [#allocation6], 0
      %s37 = smul.addr %s34, 8
      %s38 = scalar_lea.hbm %s1, %s37
      %s39 = sshll.u32 %s38, 4
      %s40 = int_to_ptr.hbm [resolvable:$true] %s39
      %s41 = sshll.u32 [#allocation5], 4
      %s42 = int_to_ptr.vmem [resolvable:$true] %s41
      %47 = dma.hbm_to_vmem [thread:$0]  %s40, 256, %s42, [#allocation6], 128, 128, 8
    $region9: #{tpu_custom_call.1} parent=1 // pred_fallthru
      _
    // Predicated region
    $region10: #{tpu_custom_call.1} parent=1 // pred_check
      _
    $region11: #{tpu_custom_call.1} parent=1 // pred_check_branch
      %49 = sbr.rel (0) target = $region13
    $region12: #{tpu_custom_call.1} parent=1 // pred_region
      %51 = dma.done [#allocation3], 256
    $region13: #{tpu_custom_call.1} parent=1 // pred_fallthru
      _
    // Predicated region
    $region14: #{tpu_custom_call.1} parent=1 // pred_check
      _
    $region15: #{tpu_custom_call.1} parent=1 // pred_check_branch
      %53 = sbr.rel (0) target = $region17
    $region16: #{tpu_custom_call.1} parent=1 // pred_region
      %55 = dma.done [#allocation6], 256
    $region17: #{tpu_custom_call.1} parent=1 // pred_fallthru
      _
    %s56 = sadd.s32 0, 0
    %p57 = scmp.lt.s32.totalorder %s56, 0
    %s58 = scalar_select %p57, %s56, 0
    %s59 = smul.u32 2, %s58
    %s60 = sadd.s32 0, 0
    %p61 = scmp.lt.s32.totalorder %s60, 0
    %s62 = scalar_select %p61, %s60, 0
    %s63 = smul.u32 2, %s62
    %p64 = scmp.eq.s32.totalorder 0, 0
    // Predicated region
    $region18: #{tpu_custom_call.1} parent=1 // pred_check
      %p65 = pneg %p64
    $region19: #{tpu_custom_call.1} parent=1 // pred_check_branch
      %67 = sbr.rel (%p65) target = $region21
    $region20: #{tpu_custom_call.1} parent=1 // pred_region
      %68 = vst [vmem:[#allocation7] sm:$0xff] 0.0
    $region21: #{tpu_custom_call.1} parent=1 // pred_fallthru
      _
    %v69 = vld [vmem:[#allocation2] sm:$0xff]
    %v70 = vld [vmem:[#allocation2 + $0x8] sm:$0xff]
    %v71 = vld [vmem:[#allocation5] sm:$0xff]
    %v72 = vld [vmem:[#allocation5 + $0x8] sm:$0xff]
    %v73 = vmax.f32 %v69, 0.0
    %v74 = vmax.f32 %v70, 0.0
    %v75 = vadd.f32 %v73, 1.0
    %v76 = vadd.f32 %v74, 1.0
    %v77 = vlog2.pop %v75
    %v78 = vmul.f32 %v77, 0.6931472
    %v79 = vlog2.pop %v76
    %v80 = vmul.f32 %v79, 0.6931472
    %v81 = vadd.f32 %v71, 1.0
    %v82 = vadd.f32 %v72, 1.0
    %v83 = vlog2.pop %v81
    %v84 = vmul.f32 %v83, 0.6931472
    %v85 = vlog2.pop %v82
    %v86 = vmul.f32 %v85, 0.6931472
    %v87 = vsub.f32 %v78, %v84
    %v88 = vsub.f32 %v80, %v86
    %v89 = vmul.f32 %v87, %v87
    %v90 = vmul.f32 %v88, %v88
    %v91 = vadd.f32 %v89, %v90
    %v92 = vadd.f32 %v91, 0.0
    %v93 = vld [vmem:[#allocation7] sm:$0xff]
    %v94 = vadd.f32 %v93, %v92
    %95 = vst [vmem:[#allocation7] sm:$0xff] %v94
    // Predicated region
    $region22: #{tpu_custom_call.1} parent=1 // pred_check
      _
    $region23: #{tpu_custom_call.1} parent=1 // pred_check_branch
      %97 = sbr.rel (0) target = $region25
    $region24: #{tpu_custom_call.1} parent=1 // pred_region
      %99 = vsyncadd [#allocation4], 0
      %s101 = sshll.u32 [#allocation7], 4
      %s102 = int_to_ptr.vmem [resolvable:$true] %s101
      %s103 = sshll.u32 %s2, 4
      %s104 = int_to_ptr.hbm [resolvable:$true] %s103
      %106 = dma.vmem_to_hbm [thread:$0]  %s102, 128, %s104, [#allocation4]
    $region25: #{tpu_custom_call.1} parent=1 // pred_fallthru
      _
    // Predicated region
    $region26: #{tpu_custom_call.1} parent=1 // pred_check
      _
    $region27: #{tpu_custom_call.1} parent=1 // pred_check_branch
      %108 = sbr.rel (0) target = $region29
    $region28: #{tpu_custom_call.1} parent=1 // pred_region
      %110 = dma.done [#allocation4], 128
    $region29: #{tpu_custom_call.1} parent=1 // pred_fallthru
      _
    %111 = vsyncpa [#allocation3], 1
    %112 = vsyncpa [#allocation6], 1
    %113 = vsyncpa [#allocation4], 1

</llo_original>
